<compile_context>
chip_gen: v7x
topology: tpu7x:2x2x1
jax: 0.10.0
libtpu: 0.0.40
codegen_flags: <defaults>
</compile_context>

<pallas_src>
import jax
import jax.numpy as jnp
from jax.experimental import pallas as pl
from jax.experimental.pallas import tpu as pltpu

SUBLANE = 8      # sublane granularity for the batch dim
MAX_TB = 512     # max batch-tile rows per grid step (multiple of 8)


def _round_up(n, m):
    return ((n + m - 1) // m) * m


def mlp_kernel(x_ref, w1_ref, b1_ref, w2_ref, b2_ref, o_ref):
    # fc1: [TB, I] @ [I, H] + [1, H]  (f32 accumulate on the MXU)
    h = jnp.dot(x_ref[...], w1_ref[...], preferred_element_type=jnp.float32)
    h = jax.nn.sigmoid(h + b1_ref[...])          # VPU add + EUP logistic
    # fc2: [TB, H] @ [H, O] + [1, O]
    out = jnp.dot(h, w2_ref[...], preferred_element_type=jnp.float32)
    o_ref[...] = (out + b2_ref[...]).astype(o_ref.dtype)


def weather_forecast_nn(x, w1, b1, w2, b2):
    """Forward pass of Weather_forecast_NN.

    x:  [B, input_size]            float32
    w1: [input_size, hidden_size], b1: [1, hidden_size]
    w2: [hidden_size, output_size], b2: [1, output_size]
    returns: [B, output_size] float32
    """
    B, I = x.shape
    H = w1.shape[1]
    O = w2.shape[1]

    # --- pad batch only (feature dims stay at their logical sizes) ----------
    Bp = _round_up(B, SUBLANE)
    tb = min(MAX_TB, Bp)
    Bp = _round_up(Bp, tb)
    grid = (Bp // tb,)

    xp = x if Bp == B else jnp.pad(x, ((0, Bp - B), (0, 0)))

    out_padded = pl.pallas_call(
        mlp_kernel,
        out_shape=jax.ShapeDtypeStruct((Bp, O), x.dtype),
        grid_spec=pl.GridSpec(
            grid=grid,
            in_specs=[
                pl.BlockSpec((tb, I), lambda i: (i, 0)),   # x: tiled over batch
                pl.BlockSpec((I, H), lambda i: (0, 0)),    # w1: VMEM-resident
                pl.BlockSpec((1, H), lambda i: (0, 0)),    # b1: VMEM-resident
                pl.BlockSpec((H, O), lambda i: (0, 0)),    # w2: VMEM-resident
                pl.BlockSpec((1, O), lambda i: (0, 0)),    # b2: VMEM-resident
            ],
            out_specs=pl.BlockSpec((tb, O), lambda i: (i, 0)),
        ),
        compiler_params=pltpu.CompilerParams(
            dimension_semantics=("parallel",),
        ),
    )(xp, w1, b1, w2, b2)

    # Slice back to the logical (unpadded) batch.
    return out_padded if Bp == B else out_padded[:B, :]


def init_params(key, input_size, hidden_size, output_size):
    # Deterministic init mimicking PyTorch nn.Linear (uniform +/- 1/sqrt(fan_in)).
    k1, k2, k3, k4 = jax.random.split(key, 4)
    bound1 = 1.0 / jnp.sqrt(input_size)
    bound2 = 1.0 / jnp.sqrt(hidden_size)
    w1 = jax.random.uniform(k1, (input_size, hidden_size), jnp.float32,
                            -bound1, bound1)
    b1 = jax.random.uniform(k2, (1, hidden_size), jnp.float32, -bound1, bound1)
    w2 = jax.random.uniform(k3, (hidden_size, output_size), jnp.float32,
                            -bound2, bound2)
    b2 = jax.random.uniform(k4, (1, output_size), jnp.float32, -bound2, bound2)
    return w1, b1, w2, b2


if __name__ == "__main__":
    # Small shapes implied by the module: input features -> hidden -> output.
    batch, input_size, hidden_size, output_size = 8, 16, 32, 4

    key = jax.random.PRNGKey(0)
    kx, kp = jax.random.split(key)
    x = jax.random.normal(kx, (batch, input_size), jnp.float32)
    w1, b1, w2, b2 = init_params(kp, input_size, hidden_size, output_size)

    out = weather_forecast_nn(x, w1, b1, w2, b2)
    jax.block_until_ready(out)

    # Pure-JAX reference check.
    ref = jax.nn.sigmoid(x @ w1 + b1) @ w2 + b2
    assert out.shape == (batch, output_size)
    assert jnp.allclose(out, ref, atol=1e-5, rtol=1e-5)

    # Also exercise the multi-step batch-tiled path (grid > 1, batch padding).
    big_batch = 1030
    xb = jax.random.normal(kx, (big_batch, input_size), jnp.float32)
    out_b = weather_forecast_nn(xb, w1, b1, w2, b2)
    jax.block_until_ready(out_b)
    ref_b = jax.nn.sigmoid(xb @ w1 + b1) @ w2 + b2
    assert out_b.shape == (big_batch, output_size)
    assert jnp.allclose(out_b, ref_b, atol=1e-5, rtol=1e-5)

    print("KERNEL_OK")
</pallas_src>

<mosaic_0001>
module attributes {stable_mosaic.version = 11 : i64} {
  func.func @mlp_kernel(%arg0: i32, %arg1: memref<8x16xf32, #tpu.memory_space<vmem>>, %arg2: memref<16x32xf32, #tpu.memory_space<vmem>>, %arg3: memref<1x32xf32, #tpu.memory_space<vmem>>, %arg4: memref<32x4xf32, #tpu.memory_space<vmem>>, %arg5: memref<1x4xf32, #tpu.memory_space<vmem>>, %arg6: memref<8x4xf32, #tpu.memory_space<vmem>>) attributes {dimension_semantics = [#tpu.dimension_semantics<parallel>], iteration_bounds = array<i64: 1>, scalar_prefetch = 0 : i64, scratch_operands = 0 : i64, tpu.core_type = #tpu.core_type<tc>, window_params = [{transform_indices = @transform_0, window_bounds = array<i64: 8, 16>}, {pipeline_mode = #tpu.pipeline_mode<synchronous>, transform_indices = @transform_1, window_bounds = array<i64: 16, 32>}, {pipeline_mode = #tpu.pipeline_mode<synchronous>, transform_indices = @transform_2, window_bounds = array<i64: 1, 32>}, {pipeline_mode = #tpu.pipeline_mode<synchronous>, transform_indices = @transform_3, window_bounds = array<i64: 32, 4>}, {pipeline_mode = #tpu.pipeline_mode<synchronous>, transform_indices = @transform_4, window_bounds = array<i64: 1, 4>}, {transform_indices = @transform_5, window_bounds = array<i64: 8, 4>}]} {
    %c0 = arith.constant 0 : index
    %c0_0 = arith.constant 0 : index
    %0 = vector.load %arg1[%c0, %c0_0] : memref<8x16xf32, #tpu.memory_space<vmem>>, vector<8x16xf32>
    %c0_1 = arith.constant 0 : index
    %c0_2 = arith.constant 0 : index
    %1 = vector.load %arg2[%c0_1, %c0_2] : memref<16x32xf32, #tpu.memory_space<vmem>>, vector<16x32xf32>
    %cst = arith.constant dense<0.000000e+00> : vector<8x32xf32>
    %2 = tpu.matmul %0, %1, %cst {dimension_numbers = #tpu.dot_dimension_numbers<[1], [0], [0], [1], [0, 0, 1, 1], [], []>} : vector<8x16xf32>, vector<16x32xf32>, vector<8x32xf32> -> vector<8x32xf32>
    %c0_3 = arith.constant 0 : index
    %c0_4 = arith.constant 0 : index
    %3 = vector.load %arg3[%c0_3, %c0_4] : memref<1x32xf32, #tpu.memory_space<vmem>>, vector<1x32xf32>
    %4 = vector.broadcast %3 : vector<1x32xf32> to vector<8x32xf32>
    %5 = arith.addf %2, %4 : vector<8x32xf32>
    %6 = arith.negf %5 : vector<8x32xf32>
    %7 = math.exp %6 : vector<8x32xf32>
    %cst_5 = arith.constant 1.000000e+00 : f32
    %8 = vector.broadcast %cst_5 : f32 to vector<8x32xf32>
    %9 = arith.addf %8, %7 : vector<8x32xf32>
    %10 = arith.divf %8, %9 : vector<8x32xf32>
    %c0_6 = arith.constant 0 : index
    %c0_7 = arith.constant 0 : index
    %11 = vector.load %arg4[%c0_6, %c0_7] : memref<32x4xf32, #tpu.memory_space<vmem>>, vector<32x4xf32>
    %cst_8 = arith.constant dense<0.000000e+00> : vector<8x4xf32>
    %12 = tpu.matmul %10, %11, %cst_8 {dimension_numbers = #tpu.dot_dimension_numbers<[1], [0], [0], [1], [0, 0, 1, 1], [], []>} : vector<8x32xf32>, vector<32x4xf32>, vector<8x4xf32> -> vector<8x4xf32>
    %c0_9 = arith.constant 0 : index
    %c0_10 = arith.constant 0 : index
    %13 = vector.load %arg5[%c0_9, %c0_10] : memref<1x4xf32, #tpu.memory_space<vmem>>, vector<1x4xf32>
    %14 = vector.broadcast %13 : vector<1x4xf32> to vector<8x4xf32>
    %15 = arith.addf %12, %14 : vector<8x4xf32>
    %c0_11 = arith.constant 0 : index
    %c0_12 = arith.constant 0 : index
    %16 = vector.load %arg6[%c0_11, %c0_12] : memref<8x4xf32, #tpu.memory_space<vmem>>, vector<8x4xf32>
    tpu.vector_store %arg6[%c0_11, %c0_12], %15 {strides = array<i32>} : memref<8x4xf32, #tpu.memory_space<vmem>>, vector<8x4xf32>,
    return
  }
  func.func @transform_0(%arg0: i32) -> (i32, i32) {
    %c0_i32 = arith.constant 0 : i32
    %c0_i32_0 = arith.constant 0 : i32
    return %arg0, %c0_i32 : i32, i32
  }
  func.func @transform_1(%arg0: i32) -> (i32, i32) {
    %c0_i32 = arith.constant 0 : i32
    %c0_i32_0 = arith.constant 0 : i32
    %c0_i32_1 = arith.constant 0 : i32
    return %c0_i32, %c0_i32_0 : i32, i32
  }
  func.func @transform_2(%arg0: i32) -> (i32, i32) {
    %c0_i32 = arith.constant 0 : i32
    %c0_i32_0 = arith.constant 0 : i32
    %c0_i32_1 = arith.constant 0 : i32
    return %c0_i32, %c0_i32_0 : i32, i32
  }
  func.func @transform_3(%arg0: i32) -> (i32, i32) {
    %c0_i32 = arith.constant 0 : i32
    %c0_i32_0 = arith.constant 0 : i32
    %c0_i32_1 = arith.constant 0 : i32
    return %c0_i32, %c0_i32_0 : i32, i32
  }
  func.func @transform_4(%arg0: i32) -> (i32, i32) {
    %c0_i32 = arith.constant 0 : i32
    %c0_i32_0 = arith.constant 0 : i32
    %c0_i32_1 = arith.constant 0 : i32
    return %c0_i32, %c0_i32_0 : i32, i32
  }
  func.func @transform_5(%arg0: i32) -> (i32, i32) {
    %c0_i32 = arith.constant 0 : i32
    %c0_i32_0 = arith.constant 0 : i32
    return %arg0, %c0_i32 : i32, i32
  }
}

</mosaic_0001>

<llo_original>
// kernel: tpu_custom_call.1
$region0: #{tpu_custom_call.1}
  #allocation0 [shape = 'u32[]', space=smem, size = 0x4, offset = 0x4, fixed_abs, tag = 'smem constant byte address 0x4 - core index']
  #allocation1 [shape = 'u32[144,128]{1,0:T(1,128)}', space=vmem, size = 0x12000, scoped, tag = 'internal scratch']
  %s0 = inlined_call_operand.vmem [shape: f32[8,16], index: 0, kind: input, shape index: {}]
  %s1 = inlined_call_operand.vmem [shape: f32[16,32], index: 1, kind: input, shape index: {}]
  %s2 = inlined_call_operand.vmem [shape: f32[1,32], index: 2, kind: input, shape index: {}]
  %s3 = inlined_call_operand.vmem [shape: f32[32,4], index: 3, kind: input, shape index: {}]
  %s4 = inlined_call_operand.vmem [shape: f32[1,4], index: 4, kind: input, shape index: {}]
  %s5 = inlined_call_operand.vmem [shape: f32[8,4], index: 5, kind: output, shape index: {}]
  %s6 = sld [smem:[#allocation0]]
  $region30: #{tpu_custom_call.1} parent=0
    _
  %s8 = ssub.s32 1, %s6
  %s9 = scalar_select 0, %s8, %s6
  // Predicated region
  $region2: #{tpu_custom_call.1} parent=0 // pred_check
    _
  $region3: #{tpu_custom_call.1} parent=0 // pred_check_branch
    %11 = sbr.rel (0) target = $region5
  $region4: #{tpu_custom_call.1} parent=0 // pred_region
    _
  $region5: #{tpu_custom_call.1} parent=0 // pred_fallthru
    _
  // Predicated region
  $region6: #{tpu_custom_call.1} parent=0 // pred_check
    _
  $region7: #{tpu_custom_call.1} parent=0 // pred_check_branch
    %13 = sbr.rel (0) target = $region9
  $region8: #{tpu_custom_call.1} parent=0 // pred_region
    _
  $region9: #{tpu_custom_call.1} parent=0 // pred_fallthru
    _
  // Predicated region
  $region10: #{tpu_custom_call.1} parent=0 // pred_check
    _
  $region11: #{tpu_custom_call.1} parent=0 // pred_check_branch
    %15 = sbr.rel (0) target = $region13
  $region12: #{tpu_custom_call.1} parent=0 // pred_region
    _
  $region13: #{tpu_custom_call.1} parent=0 // pred_fallthru
    _
  // Predicated region
  $region14: #{tpu_custom_call.1} parent=0 // pred_check
    _
  $region15: #{tpu_custom_call.1} parent=0 // pred_check_branch
    %17 = sbr.rel (0) target = $region17
  $region16: #{tpu_custom_call.1} parent=0 // pred_region
    _
  $region17: #{tpu_custom_call.1} parent=0 // pred_fallthru
    _
  // Predicated region
  $region18: #{tpu_custom_call.1} parent=0 // pred_check
    _
  $region19: #{tpu_custom_call.1} parent=0 // pred_check_branch
    %19 = sbr.rel (0) target = $region21
  $region20: #{tpu_custom_call.1} parent=0 // pred_region
    _
  $region21: #{tpu_custom_call.1} parent=0 // pred_fallthru
    _
  %v20 = vld [vmem:[%s0] sm:$0xff]
  %v21 = vld [vmem:[%s1] sm:$0xff]
  %v22 = vld [vmem:[%s1 + $0x8] sm:$0xff]
  %v23 = vld [vmem:[%s2] sm:$0x1]
  %v25 = vlaneseq
  %v26 = vshrl.u32 %v25, 7
  %v27 = vsub.s32 0, %v26
  %v28 = vrot.slane %v23, %v27
  %vm30 = vcmask 130048
  %v32 = vsel %vm30, %v20, 0
  %34 = vmatprep.subr.mxu0 0.0
  %35 = vmatpush1.msra.mxu0 %v21
  %36 = vmatprep.subr.mxu0 0.0
  %37 = vmatpush1.msra.mxu0 %v22
  %38 = vmatprep.subr.mxu0 0.0
  %39 = vmatpush1.msra.mxu0 0.0
  %40 = vmatprep.subr.mxu0 0.0
  %41 = vmatpush1.msra.mxu0 0.0
  %42 = vmatprep.subr.mxu0 0.0
  %43 = vmatpush1.msra.mxu0 0.0
  %44 = vmatprep.subr.mxu0 0.0
  %45 = vmatpush1.msra.mxu0 0.0
  %46 = vmatprep.subr.mxu0 0.0
  %47 = vmatpush1.msra.mxu0 0.0
  %48 = vmatprep.subr.mxu0 0.0
  %49 = vmatpush1.msra.mxu0 0.0
  %50 = vmatprep.subr.mxu0 0.0
  %51 = vmatpush1.msra.mxu0 0.0
  %52 = vmatprep.subr.mxu0 0.0
  %53 = vmatpush1.msra.mxu0 0.0
  %54 = vmatprep.subr.mxu0 0.0
  %55 = vmatpush1.msra.mxu0 0.0
  %56 = vmatprep.subr.mxu0 0.0
  %57 = vmatpush1.msra.mxu0 0.0
  %58 = vmatprep.subr.mxu0 0.0
  %59 = vmatpush1.msra.mxu0 0.0
  %60 = vmatprep.subr.mxu0 0.0
  %61 = vmatpush1.msra.mxu0 0.0
  %62 = vmatprep.subr.mxu0 0.0
  %63 = vmatpush1.msra.mxu0 0.0
  %64 = vmatprep.subr.mxu0 0.0
  %65 = vmatpush1.msra.mxu0 0.0
  %66 = vmatprep.subr.mxu0 0.0
  %67 = vmatpush1.msra.mxu0 0.0
  %68 = vmatprep.subr.mxu0 0.0
  %69 = vmatpush1.msra.mxu0 0.0
  %70 = vmatprep.subr.mxu0 0.0
  %71 = vmatpush1.msra.mxu0 0.0
  %72 = vmatprep.subr.mxu0 0.0
  %73 = vmatpush1.msra.mxu0 0.0
  %74 = vmatprep.subr.mxu0 0.0
  %75 = vmatpush1.msra.mxu0 0.0
  %76 = vmatprep.subr.mxu0 0.0
  %77 = vmatpush1.msra.mxu0 0.0
  %78 = vmatprep.subr.mxu0 0.0
  %79 = vmatpush1.msra.mxu0 0.0
  %80 = vmatprep.subr.mxu0 0.0
  %81 = vmatpush1.msra.mxu0 0.0
  %82 = vmatprep.subr.mxu0 0.0
  %83 = vmatpush1.msra.mxu0 0.0
  %84 = vmatprep.subr.mxu0 0.0
  %85 = vmatpush1.msra.mxu0 0.0
  %86 = vmatprep.subr.mxu0 0.0
  %87 = vmatpush1.msra.mxu0 0.0
  %88 = vmatprep.subr.mxu0 0.0
  %89 = vmatpush1.msra.mxu0 0.0
  %90 = vmatprep.subr.mxu0 0.0
  %91 = vmatpush1.msra.mxu0 0.0
  %92 = vmatprep.subr.mxu0 0.0
  %93 = vmatpush1.msra.mxu0 0.0
  %94 = vmatprep.subr.mxu0 0.0
  %95 = vmatpush1.msra.mxu0 0.0
  %96 = vmatprep.subr.mxu0 0.0
  %97 = vmatpush1.msra.mxu0 0.0
  %98 = vmatprep.mubr.f32.mxu0 0.0
  %99 = vmatmul.mubr.f32.gmra.mrb[0].mxu0 %v32
  %v100 = vpop.f32.mrb[0].mxu0
  %v101 = vadd.f32 %v28, %v100
  %v102 = vpop.f32.mrb[0].mxu0
  %103 = vdwg.mxu0
  %v104 = vxor.u32 %v101, 2147483648
  %v105 = vmul.f32 %v104, 1.442695
  %v106 = vpow.pop %v105
  %v107 = vadd.f32 %v106, 1.0
  %v108 = vrcp.pop %v107
  %v109 = vmul.f32 1.0, %v108
  %v110 = vld [vmem:[%s3] sm:$0xff]
  %v111 = vld [vmem:[%s3 + $0x8] sm:$0xff]
  %v112 = vld [vmem:[%s3 + $0x10] sm:$0xff]
  %v113 = vld [vmem:[%s3 + $0x18] sm:$0xff]
  %v114 = vld [vmem:[%s4] sm:$0x1]
  %v116 = vlaneseq
  %v117 = vshrl.u32 %v116, 7
  %v118 = vsub.s32 0, %v117
  %v119 = vrot.slane %v114, %v118
  %vm121 = vcmask 261120
  %v123 = vsel %vm121, %v109, 0
  %125 = vmatprep.subr.mxu0 0.0
  %126 = vmatpush1.msra.mxu0 %v110
  %127 = vmatprep.subr.mxu0 0.0
  %128 = vmatpush1.msra.mxu0 %v111
  %129 = vmatprep.subr.mxu0 0.0
  %130 = vmatpush1.msra.mxu0 %v112
  %131 = vmatprep.subr.mxu0 0.0
  %132 = vmatpush1.msra.mxu0 %v113
  %133 = vmatprep.subr.mxu0 0.0
  %134 = vmatpush1.msra.mxu0 0.0
  %135 = vmatprep.subr.mxu0 0.0
  %136 = vmatpush1.msra.mxu0 0.0
  %137 = vmatprep.subr.mxu0 0.0
  %138 = vmatpush1.msra.mxu0 0.0
  %139 = vmatprep.subr.mxu0 0.0
  %140 = vmatpush1.msra.mxu0 0.0
  %141 = vmatprep.subr.mxu0 0.0
  %142 = vmatpush1.msra.mxu0 0.0
  %143 = vmatprep.subr.mxu0 0.0
  %144 = vmatpush1.msra.mxu0 0.0
  %145 = vmatprep.subr.mxu0 0.0
  %146 = vmatpush1.msra.mxu0 0.0
  %147 = vmatprep.subr.mxu0 0.0
  %148 = vmatpush1.msra.mxu0 0.0
  %149 = vmatprep.subr.mxu0 0.0
  %150 = vmatpush1.msra.mxu0 0.0
  %151 = vmatprep.subr.mxu0 0.0
  %152 = vmatpush1.msra.mxu0 0.0
  %153 = vmatprep.subr.mxu0 0.0
  %154 = vmatpush1.msra.mxu0 0.0
  %155 = vmatprep.subr.mxu0 0.0
  %156 = vmatpush1.msra.mxu0 0.0
  %157 = vmatprep.subr.mxu0 0.0
  %158 = vmatpush1.msra.mxu0 0.0
  %159 = vmatprep.subr.mxu0 0.0
  %160 = vmatpush1.msra.mxu0 0.0
  %161 = vmatprep.subr.mxu0 0.0
  %162 = vmatpush1.msra.mxu0 0.0
  %163 = vmatprep.subr.mxu0 0.0
  %164 = vmatpush1.msra.mxu0 0.0
  %165 = vmatprep.subr.mxu0 0.0
  %166 = vmatpush1.msra.mxu0 0.0
  %167 = vmatprep.subr.mxu0 0.0
  %168 = vmatpush1.msra.mxu0 0.0
  %169 = vmatprep.subr.mxu0 0.0
  %170 = vmatpush1.msra.mxu0 0.0
  %171 = vmatprep.subr.mxu0 0.0
  %172 = vmatpush1.msra.mxu0 0.0
  %173 = vmatprep.subr.mxu0 0.0
  %174 = vmatpush1.msra.mxu0 0.0
  %175 = vmatprep.subr.mxu0 0.0
  %176 = vmatpush1.msra.mxu0 0.0
  %177 = vmatprep.subr.mxu0 0.0
  %178 = vmatpush1.msra.mxu0 0.0
  %179 = vmatprep.subr.mxu0 0.0
  %180 = vmatpush1.msra.mxu0 0.0
  %181 = vmatprep.subr.mxu0 0.0
  %182 = vmatpush1.msra.mxu0 0.0
  %183 = vmatprep.subr.mxu0 0.0
  %184 = vmatpush1.msra.mxu0 0.0
  %185 = vmatprep.subr.mxu0 0.0
  %186 = vmatpush1.msra.mxu0 0.0
  %187 = vmatprep.subr.mxu0 0.0
  %188 = vmatpush1.msra.mxu0 0.0
  %189 = vmatprep.mubr.f32.mxu0 0.0
  %190 = vmatmul.mubr.f32.gmra.mrb[0].mxu0 %v123
  %v191 = vpop.f32.mrb[0].mxu0
  %v192 = vadd.f32 %v119, %v191
  %v193 = vpop.f32.mrb[0].mxu0
  %194 = vdwg.mxu0
  %vm195 = vcmask 31744
  %196 = vst.msk [vmem:[%s5] sm:$0xff] %vm195, %v192
  // Predicated region
  $region22: #{tpu_custom_call.1} parent=0 // pred_check
    _
  $region23: #{tpu_custom_call.1} parent=0 // pred_check_branch
    %198 = sbr.rel (0) target = $region25
  $region24: #{tpu_custom_call.1} parent=0 // pred_region
    _
  $region25: #{tpu_custom_call.1} parent=0 // pred_fallthru
    _
  // Predicated region
  $region26: #{tpu_custom_call.1} parent=0 // pred_check
    _
  $region27: #{tpu_custom_call.1} parent=0 // pred_check_branch
    %200 = sbr.rel (0) target = $region29
  $region28: #{tpu_custom_call.1} parent=0 // pred_region
    _
  $region29: #{tpu_custom_call.1} parent=0 // pred_fallthru
    _

</llo_original>
